<compile_context>
chip_gen: v5e
topology: v5e:2x2
jax: 0.10.0
libtpu: 0.0.40
codegen_flags: <defaults>
</compile_context>

<pallas_src>
import functools

import jax
import jax.numpy as jnp
import numpy as np
from jax.experimental import pallas as pl
from jax.experimental.pallas import tpu as pltpu

_MIB = 1024 * 1024


# ----------------------------------------------------------------------------
# Tiling / VMEM heuristics
# ----------------------------------------------------------------------------
def _vmem_limit_bytes():
    """Generation-aware scoped-VMEM limit (~48 MiB on v7x, up to 96 MiB on v5e/v6e)."""
    try:
        phys = int(pltpu.get_tpu_info().vmem_capacity_bytes)
    except Exception:
        phys = 64 * _MIB  # conservative (v7x-sized) fallback
    return max(32 * _MIB, min(phys - 16 * _MIB, 96 * _MIB))


def _channel_tile(c, n, hw, itemsize, budget):
    """Channel tile for the fused path: multiple of 8 dividing C (else C), sized so
    the (N, tc, HW) block fits `budget` while keeping >=4 (ideally >=8) grid steps.
    Returns None when even the smallest tile does not fit -> use two-pass path."""
    per_chan = n * hw * (4 * itemsize + 12)  # dbl-buffered in/out + f32 temporaries
    cands = [t for t in range(8, c + 1, 8) if c % t == 0] or [c]
    fits = [t for t in cands if t * per_chan <= budget]
    if not fits:
        return None
    for min_steps in (8, 4, 2):
        good = [t for t in fits if c // t >= min_steps]
        if good:
            return max(good)  # biggest block that still leaves enough grid steps
    return max(fits)


def _largest_div_mult(n, m, cap):
    """Largest d with d | n, d % m == 0, d <= cap (None if no such d)."""
    best, d = None, m
    cap = min(cap, n)
    while d <= cap:
        if n % d == 0:
            best = d
        d += m
    return best


def _two_pass_tiles(n, c, hw, itemsize, budget):
    """(tc, tn, thw) for the spatially tiled two-pass path."""
    per_elem = 4 * itemsize + 8
    tc = next((t for t in range(8, c + 1, 8) if c % t == 0), c)
    max_elems = max(1, budget // per_elem)
    # Prefer tiling the flattened spatial axis (lane-dense), keep full batch.
    thw = _largest_div_mult(hw, 128, max(128, max_elems // max(1, n * tc)))
    if thw is not None:
        return tc, n, thw
    # HW has no usable multiple-of-128 divisor: keep full HW, tile batch instead.
    cap_tn = max(1, max_elems // (tc * hw))
    tn = max((d for d in range(1, n + 1) if n % d == 0 and d <= cap_tn), default=1)
    return tc, tn, hw


# ----------------------------------------------------------------------------
# Kernels
# ----------------------------------------------------------------------------
def _br_fused_kernel(x_ref, p_ref, o_ref, *, eps, inv_count):
    # x_ref: (N, TC, HW)   p_ref: (3, TC, 1) f32 [gamma, beta, alpha]   o_ref: (N, TC, HW)
    # ---- stats phase: single sweep, sum and sum-of-squares (E[x], E[x^2]) ----
    xs = x_ref[...].astype(jnp.float32)
    s = jnp.sum(jnp.sum(xs, axis=0), axis=1, keepdims=True)        # (TC, 1)
    sq = jnp.sum(jnp.sum(xs * xs, axis=0), axis=1, keepdims=True)  # (TC, 1)
    mean = s * inv_count
    var = jnp.maximum(sq * inv_count - mean * mean, 0.0)           # biased var; clamp cancellation
    inv_std = jax.lax.rsqrt(var + eps)                             # EUP rsqrt

    gamma, beta, alpha = p_ref[0], p_ref[1], p_ref[2]              # (TC, 1) each, f32
    scale = gamma * inv_std
    shift = beta - mean * scale

    # ---- apply phase: re-read x from VMEM (cheap) instead of keeping f32 slab live;
    #      bf16 inputs stay bf16 here (native on v6e/v7x VPUs, halves vreg pressure) ----
    cd = jnp.bfloat16 if o_ref.dtype == jnp.bfloat16 else jnp.float32
    x = x_ref[...].astype(cd)
    y = x * scale.astype(cd)[None] + shift.astype(cd)[None]
    o_ref[...] = jnp.where(y > 0, y, alpha.astype(cd)[None] * y).astype(o_ref.dtype)


def _stats_kernel(x_ref, s_ref, sq_ref):
    # Accumulate per-channel sum and sum-of-squares over (batch, spatial) tiles.
    @pl.when(jnp.logical_and(pl.program_id(1) == 0, pl.program_id(2) == 0))
    def _():
        s_ref[...] = jnp.zeros_like(s_ref)
        sq_ref[...] = jnp.zeros_like(sq_ref)

    x = x_ref[...].astype(jnp.float32)                             # (TN, TC, THW)
    s_ref[...] += jnp.sum(jnp.sum(x, axis=0), axis=1, keepdims=True)
    sq_ref[...] += jnp.sum(jnp.sum(x * x, axis=0), axis=1, keepdims=True)


def _apply_kernel(x_ref, p_ref, o_ref):
    # Elementwise normalize + PReLU with precomputed per-channel scale/shift/alpha.
    cd = jnp.bfloat16 if o_ref.dtype == jnp.bfloat16 else jnp.float32
    scale = p_ref[0].astype(cd)[None]                              # (1, TC, 1)
    shift = p_ref[1].astype(cd)[None]
    alpha = p_ref[2].astype(cd)[None]
    y = x_ref[...].astype(cd) * scale + shift
    o_ref[...] = jnp.where(y > 0, y, alpha * y).astype(o_ref.dtype)


# ----------------------------------------------------------------------------
# Wrapper
# ----------------------------------------------------------------------------
def br_forward(x_nchw, gamma, beta, alpha, *, eps=1e-5,
               force_two_pass=False, tile_override=None):
    """BatchNorm2d (batch statistics, biased variance) + per-channel PReLU."""
    n, c, h, w = x_nchw.shape
    hw = h * w
    itemsize = jnp.dtype(x_nchw.dtype).itemsize
    x3 = x_nchw.reshape(n, c, hw)                  # contiguous reshape, no copy

    g32 = gamma.astype(jnp.float32).reshape(c)
    b32 = beta.astype(jnp.float32).reshape(c)
    a32 = alpha.astype(jnp.float32).reshape(c)

    vmem_limit = _vmem_limit_bytes()
    budget = int(vmem_limit * 0.75)
    inv_count = 1.0 / float(n * hw)

    tc = None if force_two_pass else _channel_tile(c, n, hw, itemsize, budget)

    if tc is not None:
        # ---- fused single-kernel path ----
        params = jnp.stack([g32, b32, a32], axis=0).reshape(3, c, 1)
        kernel = functools.partial(_br_fused_kernel, eps=float(eps), inv_count=inv_count)
        out = pl.pallas_call(
            kernel,
            out_shape=jax.ShapeDtypeStruct((n, c, hw), x_nchw.dtype),
            grid=(c // tc,),
            in_specs=[
                pl.BlockSpec((n, tc, hw), lambda i: (0, i, 0)),
                pl.BlockSpec((3, tc, 1), lambda i: (0, i, 0)),
            ],
            out_specs=pl.BlockSpec((n, tc, hw), lambda i: (0, i, 0)),
            compiler_params=pltpu.CompilerParams(
                dimension_semantics=("parallel",),          # channel tiles independent
                vmem_limit_bytes=vmem_limit),
            cost_estimate=pl.CostEstimate(
                flops=7 * n * c * hw,
                transcendentals=c,
                bytes_accessed=2 * n * c * hw * itemsize),
        )(x3, params)
        # TODO(synk): BatchNorm2d running_mean/running_var momentum update is module
        # training state (a side effect), not part of the returned tensor; omitted.
        return out.reshape(n, c, h, w)

    # ---- two-pass fallback: spatially tiled stats + elementwise apply ----
    if tile_override is not None:
        tc2, tn, thw = tile_override
    else:
        tc2, tn, thw = _two_pass_tiles(n, c, hw, itemsize, budget)
    grid = (c // tc2, n // tn, hw // thw)

    s_sum, s_sq = pl.pallas_call(
        _stats_kernel,
        out_shape=(jax.ShapeDtypeStruct((c, 1), jnp.float32),
                   jax.ShapeDtypeStruct((c, 1), jnp.float32)),
        grid=grid,
        in_specs=[pl.BlockSpec((tn, tc2, thw), lambda ci, ni, hi: (ni, ci, hi))],
        out_specs=(pl.BlockSpec((tc2, 1), lambda ci, ni, hi: (ci, 0)),
                   pl.BlockSpec((tc2, 1), lambda ci, ni, hi: (ci, 0))),
        compiler_params=pltpu.CompilerParams(
            dimension_semantics=("parallel", "arbitrary", "arbitrary"),
            vmem_limit_bytes=vmem_limit),
        cost_estimate=pl.CostEstimate(
            flops=3 * n * c * hw,
            transcendentals=0,
            bytes_accessed=n * c * hw * itemsize),
    )(x3)

    # Tiny per-channel finalize on (C,)-sized arrays (negligible cost).
    mean = s_sum[:, 0] * inv_count
    var = jnp.maximum(s_sq[:, 0] * inv_count - mean * mean, 0.0)
    inv_std = jax.lax.rsqrt(var + jnp.float32(eps))
    scale = g32 * inv_std
    shift = b32 - mean * scale
    params = jnp.stack([scale, shift, a32], axis=0).reshape(3, c, 1)

    out = pl.pallas_call(
        _apply_kernel,
        out_shape=jax.ShapeDtypeStruct((n, c, hw), x_nchw.dtype),
        grid=grid,
        in_specs=[pl.BlockSpec((tn, tc2, thw), lambda ci, ni, hi: (ni, ci, hi)),
                  pl.BlockSpec((3, tc2, 1), lambda ci, ni, hi: (0, ci, 0))],
        out_specs=pl.BlockSpec((tn, tc2, thw), lambda ci, ni, hi: (ni, ci, hi)),
        compiler_params=pltpu.CompilerParams(
            dimension_semantics=("parallel", "parallel", "parallel"),
            vmem_limit_bytes=vmem_limit),
        cost_estimate=pl.CostEstimate(
            flops=4 * n * c * hw,
            transcendentals=0,
            bytes_accessed=2 * n * c * hw * itemsize),
    )(x3, params)
    # TODO(synk): running_mean/running_var momentum update omitted (module side effect).
    return out.reshape(n, c, h, w)


# ----------------------------------------------------------------------------
# Reference + test
# ----------------------------------------------------------------------------
def _ref_forward(x, gamma, beta, alpha, eps=1e-5):
    mean = jnp.mean(x, axis=(0, 2, 3), keepdims=True)
    var = jnp.var(x, axis=(0, 2, 3), keepdims=True)
    y = (x - mean) * jax.lax.rsqrt(var + eps)
    y = y * gamma[None, :, None, None] + beta[None, :, None, None]
    return jnp.where(y > 0, y, alpha[None, :, None, None] * y)


if __name__ == "__main__":
    key = jax.random.PRNGKey(0)
    kx, kg, kb, ka = jax.random.split(key, 4)
    n, c, h, w = 2, 32, 16, 16
    x = jax.random.normal(kx, (n, c, h, w), jnp.float32)
    gamma = 1.0 + 0.1 * jax.random.normal(kg, (c,), jnp.float32)    # bn.weight
    beta = 0.1 * jax.random.normal(kb, (c,), jnp.float32)           # bn.bias
    alpha = 0.25 + 0.05 * jax.random.normal(ka, (c,), jnp.float32)  # PReLU slope

    ref = jax.block_until_ready(_ref_forward(x, gamma, beta, alpha))

    # Fused single-kernel path (grid of 4 channel tiles here).
    out = jax.block_until_ready(br_forward(x, gamma, beta, alpha))
    assert out.shape == (n, c, h, w), out.shape
    np.testing.assert_allclose(np.asarray(out), np.asarray(ref), rtol=1e-4, atol=1e-4)

    # Two-pass VMEM-bounded fallback, forced with small tiles for coverage
    # (exercises the cross-tile sum/sumsq accumulation).
    out2 = jax.block_until_ready(
        br_forward(x, gamma, beta, alpha, force_two_pass=True, tile_override=(8, 1, 128)))
    np.testing.assert_allclose(np.asarray(out2), np.asarray(ref), rtol=1e-4, atol=1e-4)

    print("KERNEL_OK")
</pallas_src>

<mosaic_0001>
module attributes {stable_mosaic.version = 11 : i64} {
  func.func @_br_fused_kernel(%arg0: i32, %arg1: memref<2x8x256xf32, #tpu.memory_space<vmem>>, %arg2: memref<3x8x1xf32, #tpu.memory_space<vmem>>, %arg3: memref<2x8x256xf32, #tpu.memory_space<vmem>>) attributes {dimension_semantics = [#tpu.dimension_semantics<parallel>], iteration_bounds = array<i64: 4>, scalar_prefetch = 0 : i64, scratch_operands = 0 : i64, tpu.core_type = #tpu.core_type<tc>, window_params = [{transform_indices = @transform_0, window_bounds = array<i64: 2, 8, 256>}, {transform_indices = @transform_1, window_bounds = array<i64: 3, 8, 1>}, {transform_indices = @transform_2, window_bounds = array<i64: 2, 8, 256>}]} {
    %c0 = arith.constant 0 : index
    %c0_0 = arith.constant 0 : index
    %c0_1 = arith.constant 0 : index
    %0 = vector.load %arg1[%c0, %c0_0, %c0_1] : memref<2x8x256xf32, #tpu.memory_space<vmem>>, vector<2x8x256xf32>
    %cst = arith.constant dense<0.000000e+00> : vector<8x256xf32>
    %1 = vector.multi_reduction <add>, %0, %cst [0] : vector<2x8x256xf32> to vector<8x256xf32>
    %cst_2 = arith.constant dense<0.000000e+00> : vector<8xf32>
    %2 = vector.multi_reduction <add>, %1, %cst_2 [1] : vector<8x256xf32> to vector<8xf32>
    %3 = vector.shape_cast %2 : vector<8xf32> to vector<8x1xf32>
    %4 = arith.mulf %0, %0 : vector<2x8x256xf32>
    %cst_3 = arith.constant dense<0.000000e+00> : vector<8x256xf32>
    %5 = vector.multi_reduction <add>, %4, %cst_3 [0] : vector<2x8x256xf32> to vector<8x256xf32>
    %cst_4 = arith.constant dense<0.000000e+00> : vector<8xf32>
    %6 = vector.multi_reduction <add>, %5, %cst_4 [1] : vector<8x256xf32> to vector<8xf32>
    %7 = vector.shape_cast %6 : vector<8xf32> to vector<8x1xf32>
    %cst_5 = arith.constant 0.001953125 : f32
    %8 = vector.broadcast %cst_5 : f32 to vector<8x1xf32>
    %9 = arith.mulf %3, %8 : vector<8x1xf32>
    %cst_6 = arith.constant 0.001953125 : f32
    %10 = vector.broadcast %cst_6 : f32 to vector<8x1xf32>
    %11 = arith.mulf %7, %10 : vector<8x1xf32>
    %12 = arith.mulf %9, %9 : vector<8x1xf32>
    %13 = arith.subf %11, %12 : vector<8x1xf32>
    %cst_7 = arith.constant 0.000000e+00 : f32
    %14 = vector.broadcast %cst_7 : f32 to vector<8x1xf32>
    %15 = arith.maximumf %13, %14 : vector<8x1xf32>
    %cst_8 = arith.constant 9.99999974E-6 : f32
    %16 = vector.broadcast %cst_8 : f32 to vector<8x1xf32>
    %17 = arith.addf %15, %16 : vector<8x1xf32>
    %18 = math.rsqrt %17 : vector<8x1xf32>
    %c0_9 = arith.constant 0 : index
    %c0_10 = arith.constant 0 : index
    %c0_11 = arith.constant 0 : index
    %19 = vector.load %arg2[%c0_9, %c0_10, %c0_11] : memref<3x8x1xf32, #tpu.memory_space<vmem>>, vector<1x8x1xf32>
    %20 = vector.shape_cast %19 : vector<1x8x1xf32> to vector<8x1xf32>
    %c1 = arith.constant 1 : index
    %c0_12 = arith.constant 0 : index
    %c0_13 = arith.constant 0 : index
    %21 = vector.load %arg2[%c1, %c0_12, %c0_13] : memref<3x8x1xf32, #tpu.memory_space<vmem>>, vector<1x8x1xf32>
    %22 = vector.shape_cast %21 : vector<1x8x1xf32> to vector<8x1xf32>
    %c2 = arith.constant 2 : index
    %c0_14 = arith.constant 0 : index
    %c0_15 = arith.constant 0 : index
    %23 = vector.load %arg2[%c2, %c0_14, %c0_15] : memref<3x8x1xf32, #tpu.memory_space<vmem>>, vector<1x8x1xf32>
    %24 = vector.shape_cast %23 : vector<1x8x1xf32> to vector<8x1xf32>
    %25 = arith.mulf %20, %18 : vector<8x1xf32>
    %26 = arith.mulf %9, %25 : vector<8x1xf32>
    %27 = arith.subf %22, %26 : vector<8x1xf32>
    %c0_16 = arith.constant 0 : index
    %c0_17 = arith.constant 0 : index
    %c0_18 = arith.constant 0 : index
    %28 = vector.load %arg1[%c0_16, %c0_17, %c0_18] : memref<2x8x256xf32, #tpu.memory_space<vmem>>, vector<2x8x256xf32>
    %29 = vector.shape_cast %25 : vector<8x1xf32> to vector<1x8x1xf32>
    %30 = vector.broadcast %29 : vector<1x8x1xf32> to vector<2x8x256xf32>
    %31 = arith.mulf %28, %30 : vector<2x8x256xf32>
    %32 = vector.shape_cast %27 : vector<8x1xf32> to vector<1x8x1xf32>
    %33 = vector.broadcast %32 : vector<1x8x1xf32> to vector<2x8x256xf32>
    %34 = arith.addf %31, %33 : vector<2x8x256xf32>
    %cst_19 = arith.constant 0.000000e+00 : f32
    %35 = vector.broadcast %cst_19 : f32 to vector<2x8x256xf32>
    %36 = arith.cmpf ogt, %34, %35 : vector<2x8x256xf32>
    %37 = vector.shape_cast %24 : vector<8x1xf32> to vector<1x8x1xf32>
    %38 = vector.broadcast %37 : vector<1x8x1xf32> to vector<2x8x256xf32>
    %39 = arith.mulf %38, %34 : vector<2x8x256xf32>
    %40 = arith.select %36, %34, %39 : vector<2x8x256xi1>, vector<2x8x256xf32>
    %c0_20 = arith.constant 0 : index
    %c0_21 = arith.constant 0 : index
    %c0_22 = arith.constant 0 : index
    %41 = vector.load %arg3[%c0_20, %c0_21, %c0_22] : memref<2x8x256xf32, #tpu.memory_space<vmem>>, vector<2x8x256xf32>
    tpu.vector_store %arg3[%c0_20, %c0_21, %c0_22], %40 {strides = array<i32>} : memref<2x8x256xf32, #tpu.memory_space<vmem>>, vector<2x8x256xf32>,
    return
  }
  func.func @transform_0(%arg0: i32) -> (i32, i32, i32) {
    %c0_i32 = arith.constant 0 : i32
    %c0_i32_0 = arith.constant 0 : i32
    %c0_i32_1 = arith.constant 0 : i32
    return %c0_i32, %arg0, %c0_i32_0 : i32, i32, i32
  }
  func.func @transform_1(%arg0: i32) -> (i32, i32, i32) {
    %c0_i32 = arith.constant 0 : i32
    %c0_i32_0 = arith.constant 0 : i32
    %c0_i32_1 = arith.constant 0 : i32
    return %c0_i32, %arg0, %c0_i32_0 : i32, i32, i32
  }
  func.func @transform_2(%arg0: i32) -> (i32, i32, i32) {
    %c0_i32 = arith.constant 0 : i32
    %c0_i32_0 = arith.constant 0 : i32
    %c0_i32_1 = arith.constant 0 : i32
    return %c0_i32, %arg0, %c0_i32_0 : i32, i32, i32
  }
}

</mosaic_0001>

<llo_original>
// kernel: tpu_custom_call.1
$region0: #{tpu_custom_call.1}
  #allocation0 [shape = 'u32[]', space=smem, size = 0x4, offset = 0x4, fixed_abs, tag = 'smem constant byte address 0x4 - core index']
  #allocation1 [shape = 'u32[72,128]{1,0:T(1,128)}', space=vmem, size = 0x9000, scoped, tag = 'internal scratch']
  %s0 = inlined_call_operand.hbm [shape: f32[2,32,256], index: 0, kind: input, shape index: {}]
  %s1 = inlined_call_operand.vmem [shape: f32[3,32,1], index: 1, kind: input, shape index: {}]
  %s2 = inlined_call_operand.hbm [shape: f32[2,32,256], index: 2, kind: output, shape index: {}]
  %s3 = sld [smem:[#allocation0]]
  $region83: #{tpu_custom_call.1} parent=0
    _
  %s5 = ssub.s32 1, %s3
  %s6 = scalar_select 0, %s5, %s3
  $region1: #{tpu_custom_call.1} parent=0
    #allocation2 [shape = 'u8[32768]{0}', space=vmem, size = 0x8000, scoped, tag = 'input window, operand 0']
    #allocation3 [shape = 's32[2]{0}', space=sflag, size = 0x8, scoped, tag = 'scoped memory for tpu_custom_call.1']
    #allocation4 [shape = 's32[2]{0}', space=sflag, size = 0x8, scoped, tag = 'scoped memory for tpu_custom_call.1']
    #allocation5 [shape = 'u8[24576]{0}', space=vmem, size = 0x6000, scoped, tag = 'input window, operand 1']
    #allocation6 [shape = 'u8[32768]{0}', space=vmem, size = 0x8000, scoped, tag = 'output window, operand 0']
    %7 = vsyncpa [#allocation3], 0
    %s8 = scalar_lea.sflag [#allocation3], 1
    %9 = vsyncpa %s8, 0
    %10 = vsyncpa [#allocation4], 0
    %s11 = scalar_lea.sflag [#allocation4], 1
    %12 = vsyncpa %s11, 0
    loop: start=0, step=1, limit=6
    $region2: #{tpu_custom_call.1} parent=1 // loop_pre_header
      _
    $region3: #{tpu_custom_call.1} parent=1 // loop_header
      %s14 = sphi 0, %s18
      %p15 = scmp.ge.s32.totalorder %s14, 6
      %s24 = sphi 0, %s26
      %s27 = sphi 0, %s24
      %s28 = sphi 0, %s27
      %s44 = sphi 0, %s28
      %s50 = sphi 0, %s52
      %s53 = sphi 0, %s50
      %s54 = sphi 0, %s53
      %s70 = sphi 0, %s54
      %s76 = sphi 0, %s78
      %s79 = sphi 0, %s76
      %s80 = sphi 0, %s79
      %s96 = sphi 0, %s80
    $region4: #{tpu_custom_call.1} parent=1 // loop_header_branch
      %17 = sbr.rel (%p15) target = $region8
    $region5: #{tpu_custom_call.1} parent=1 // loop_body
      %s19 = ssub.s32 %s14, 1
      %s20 = ssub.s32 %s14, 2
      %s21 = sadd.s32 %s14, 1
      %s22 = ssub.s32 %s14, %s21
      %p23 = scmp.eq.s32.totalorder %s22, 0
      %s25 = sadd.s32 %s24, 1
      %s26 = scalar_select %p23, %s24, %s25
      %p29 = pneg %p23
      %p30 = scmp.eq.s32.totalorder %s14, 3
      %p31 = por %p29, %p30
      %p32 = scmp.ne.s32.totalorder %s24, %s27
      %p33 = scmp.eq.s32.totalorder %s14, 0
      %p34 = por %p32, %p33
      %p35 = scmp.ne.s32.totalorder %s24, %s27
      %p36 = scmp.eq.s32.totalorder %s19, 3
      %p37 = por %p35, %p36
      %p38 = scmp.ne.s32.totalorder %s27, %s28
      %p39 = scmp.eq.s32.totalorder %s19, 0
      %p40 = por %p38, %p39
      %p41 = scmp.ne.s32.totalorder %s27, %s28
      %p42 = scmp.eq.s32.totalorder %s20, 3
      %p43 = por %p41, %p42
      %p45 = scmp.ne.s32.totalorder %s28, %s44
      %p46 = scmp.eq.s32.totalorder %s20, 0
      %p47 = por %p45, %p46
      %s48 = ssub.s32 %s14, %s21
      %p49 = scmp.eq.s32.totalorder %s48, 0
      %s51 = sadd.s32 %s50, 1
      %s52 = scalar_select %p49, %s50, %s51
      %p55 = pneg %p49
      %p56 = scmp.eq.s32.totalorder %s14, 3
      %p57 = por %p55, %p56
      %p58 = scmp.ne.s32.totalorder %s50, %s53
      %p59 = scmp.eq.s32.totalorder %s14, 0
      %p60 = por %p58, %p59
      %p61 = scmp.ne.s32.totalorder %s50, %s53
      %p62 = scmp.eq.s32.totalorder %s19, 3
      %p63 = por %p61, %p62
      %p64 = scmp.ne.s32.totalorder %s53, %s54
      %p65 = scmp.eq.s32.totalorder %s19, 0
      %p66 = por %p64, %p65
      %p67 = scmp.ne.s32.totalorder %s53, %s54
      %p68 = scmp.eq.s32.totalorder %s20, 3
      %p69 = por %p67, %p68
      %p71 = scmp.ne.s32.totalorder %s54, %s70
      %p72 = scmp.eq.s32.totalorder %s20, 0
      %p73 = por %p71, %p72
      %s74 = ssub.s32 %s14, %s21
      %p75 = scmp.eq.s32.totalorder %s74, 0
      %s77 = sadd.s32 %s76, 1
      %s78 = scalar_select %p75, %s76, %s77
      %p81 = pneg %p75
      %p82 = scmp.eq.s32.totalorder %s14, 3
      %p83 = por %p81, %p82
      %p84 = scmp.ne.s32.totalorder %s76, %s79
      %p85 = scmp.eq.s32.totalorder %s14, 0
      %p86 = por %p84, %p85
      %p87 = scmp.ne.s32.totalorder %s76, %s79
      %p88 = scmp.eq.s32.totalorder %s19, 3
      %p89 = por %p87, %p88
      %p90 = scmp.ne.s32.totalorder %s79, %s80
      %p91 = scmp.eq.s32.totalorder %s19, 0
      %p92 = por %p90, %p91
      %p93 = scmp.ne.s32.totalorder %s79, %s80
      %p94 = scmp.eq.s32.totalorder %s20, 3
      %p95 = por %p93, %p94
      %p97 = scmp.ne.s32.totalorder %s80, %s96
      %p98 = scmp.eq.s32.totalorder %s20, 0
      %p99 = por %p97, %p98
      %p100 = scmp.le.s32.totalorder 1, %s14
      %p101 = scmp.lt.s32.totalorder %s14, 5
      %p102 = pnand %p100, %p101
      %p103 = pneg %p102
      // Predicated region
      $region9: #{tpu_custom_call.1} parent=5 // pred_check
        _
      $region10: #{tpu_custom_call.1} parent=5 // pred_check_branch
        %105 = sbr.rel (%p102) target = $region12
      $region11: #{tpu_custom_call.1} parent=5 // pred_region
        %s106 = ssub.s32 %s14, 1
      $region12: #{tpu_custom_call.1} parent=5 // pred_fallthru
        _
      %p107 = scmp.lt.s32.totalorder %s14, 4
      // Predicated region
      $region13: #{tpu_custom_call.1} parent=5 // pred_check
        %p108 = pneg %p107
      $region14: #{tpu_custom_call.1} parent=5 // pred_check_branch
        %110 = sbr.rel (%p108) target = $region16
      $region15: #{tpu_custom_call.1} parent=5 // pred_region
        // Predicated region
        $region17: #{tpu_custom_call.1} parent=15 // pred_check
          %p111 = pneg %p34
        $region18: #{tpu_custom_call.1} parent=15 // pred_check_branch
          %113 = sbr.rel (%p111) target = $region20
        $region19: #{tpu_custom_call.1} parent=15 // pred_region
          %s114 = sand.u32 %s24, 1
          %s115 = scalar_lea.sflag [#allocation3], %s114
          %s116 = sand.u32 %s24, 1
          %s117 = smul.addr %s116, 32
          %s118 = scalar_lea.vmem [#allocation2], %s117
          %120 = vsyncadd %s115, 0
          %s121 = smul.addr %s14, 2
          %s122 = smul.addr %s121, 8
          %s123 = scalar_lea.hbm %s0, %s122
          %s124 = sshll.u32 %s123, 4
          %s125 = int_to_ptr.hbm [resolvable:$true] %s124
          %s126 = sshll.u32 %s118, 4
          %s127 = int_to_ptr.vmem [resolvable:$true] %s126
          %132 = dma.hbm_to_vmem [thread:$0]  %s125, 512, %s127, %s115, 1024, 256, 16
        $region20: #{tpu_custom_call.1} parent=15 // pred_fallthru
          _
        // Predicated region
        $region21: #{tpu_custom_call.1} parent=15 // pred_check
          %p133 = pneg %p60
        $region22: #{tpu_custom_call.1} parent=15 // pred_check_branch
          %135 = sbr.rel (%p133) target = $region24
        $region23: #{tpu_custom_call.1} parent=15 // pred_region
          %s136 = sand.u32 %s50, 1
          %s137 = sand.u32 %s50, 1
          %s138 = smul.addr %s137, 24
          %s139 = scalar_lea.vmem [#allocation5], %s138
          %s140 = smul.addr %s14, 8
          %s141 = scalar_lea.vmem %s1, %s140
          // Predicated region
          $region25: #{tpu_custom_call.1} parent=23 // pred_check
            _
          $region26: #{tpu_custom_call.1} parent=23 // pred_check_branch
            %143 = sbr.rel (0) target = $region28
          $region27: #{tpu_custom_call.1} parent=23 // pred_region
            // Predicated region
            $region29: #{tpu_custom_call.1} parent=27 // pred_check
              _
            $region30: #{tpu_custom_call.1} parent=27 // pred_check_branch
              %145 = sbr.rel (0) target = $region32
            $region31: #{tpu_custom_call.1} parent=27 // pred_region
              // Predicated region
              $region44: #{tpu_custom_call.1} parent=31 // pred_check
                _
              $region45: #{tpu_custom_call.1} parent=31 // pred_check_branch
                %165 = sbr.rel (0) target = $region47
              $region46: #{tpu_custom_call.1} parent=31 // pred_region
                loop: start=0, step=1, limit=1
                $region48: #{tpu_custom_call.1} parent=46 // loop_pre_header
                  _
                $region49: #{tpu_custom_call.1} parent=46 // loop_header
                  %s167 = sphi 0, %s171
                  %p168 = scmp.ge.s32.totalorder %s167, 1
                  %s172 = sphi %s141, %s141
                  %s173 = sphi %s139, %s139
                $region50: #{tpu_custom_call.1} parent=46 // loop_header_branch
                  %170 = sbr.rel (%p168) target = $region54
                $region51: #{tpu_custom_call.1} parent=46 // loop_body
                  %v174 = vld [vmem:[%s172] sm:$0xff]
                  %175 = vst [vmem:[%s173] sm:$0xff] %v174
                  %v176 = vld [vmem:[%s172 + $0x20] sm:$0xff]
                  %177 = vst [vmem:[%s173 + $0x8] sm:$0xff] %v176
                  %v178 = vld [vmem:[%s172 + $0x40] sm:$0xff]
                  %179 = vst [vmem:[%s173 + $0x10] sm:$0xff] %v178
                $region52: #{tpu_custom_call.1} parent=46 // loop_footer
                  %s171 = sadd.s32 1, %s167
                $region53: #{tpu_custom_call.1} parent=46 // loop_footer_branch
                  %166 = sbr.rel target = $region49
                $region54: #{tpu_custom_call.1} parent=46 // loop_exit
                  _
              $region47: #{tpu_custom_call.1} parent=31 // pred_fallthru
                _
              // Predicated region
              $region55: #{tpu_custom_call.1} parent=31 // pred_check
                _
              $region56: #{tpu_custom_call.1} parent=31 // pred_check_branch
                %181 = sbr.rel target = $region58
              $region57: #{tpu_custom_call.1} parent=31 // pred_region
                _
              $region58: #{tpu_custom_call.1} parent=31 // pred_fallthru
                _
            $region32: #{tpu_custom_call.1} parent=27 // pred_fallthru
              _
            // Predicated region
            $region33: #{tpu_custom_call.1} parent=27 // pred_check
              _
            $region34: #{tpu_custom_call.1} parent=27 // pred_check_branch
              %147 = sbr.rel target = $region36
            $region35: #{tpu_custom_call.1} parent=27 // pred_region
              %s149 = ssub.s32 256, 1
              loop: start=0, step=1, limit=1
              $region37: #{tpu_custom_call.1} parent=35 // loop_pre_header
                _
              $region38: #{tpu_custom_call.1} parent=35 // loop_header
                %s151 = sphi 0, %s155
                %p152 = scmp.ge.s32.totalorder %s151, 1
                %s156 = sphi %s141, %s141
                %s157 = sphi %s139, %s139
              $region39: #{tpu_custom_call.1} parent=35 // loop_header_branch
                %154 = sbr.rel (%p152) target = $region43
              $region40: #{tpu_custom_call.1} parent=35 // loop_body
                %v158 = vld [vmem:[%s156] sm:%s149]
                %159 = vst [vmem:[%s157] sm:%s149] %v158
                %v160 = vld [vmem:[%s156 + $0x20] sm:%s149]
                %161 = vst [vmem:[%s157 + $0x8] sm:%s149] %v160
                %v162 = vld [vmem:[%s156 + $0x40] sm:%s149]
                %163 = vst [vmem:[%s157 + $0x10] sm:%s149] %v162
              $region41: #{tpu_custom_call.1} parent=35 // loop_footer
                %s155 = sadd.s32 1, %s151
              $region42: #{tpu_custom_call.1} parent=35 // loop_footer_branch
                %150 = sbr.rel target = $region38
              $region43: #{tpu_custom_call.1} parent=35 // loop_exit
                _
            $region36: #{tpu_custom_call.1} parent=27 // pred_fallthru
              _
          $region28: #{tpu_custom_call.1} parent=23 // pred_fallthru
            _
          %182 = vnop
        $region24: #{tpu_custom_call.1} parent=15 // pred_fallthru
          _
      $region16: #{tpu_custom_call.1} parent=5 // pred_fallthru
        _
      %p183 = scmp.le.s32.totalorder 1, %s14
      %p184 = scmp.lt.s32.totalorder %s14, 5
      %p185 = pnand %p183, %p184
      %p186 = pneg %p185
      // Predicated region
      $region59: #{tpu_custom_call.1} parent=5 // pred_check
        _
      $region60: #{tpu_custom_call.1} parent=5 // pred_check_branch
        %188 = sbr.rel (%p185) target = $region62
      $region61: #{tpu_custom_call.1} parent=5 // pred_region
        %s189 = ssub.s32 %s14, 1
        %s190 = sand.u32 %s27, 1
        %s191 = scalar_lea.sflag [#allocation3], %s190
        %s192 = sand.u32 %s27, 1
        %s193 = smul.addr %s192, 32
        %s194 = scalar_lea.vmem [#allocation2], %s193
        // Predicated region
        $region63: #{tpu_custom_call.1} parent=61 // pred_check
          %p195 = pneg %p40
        $region64: #{tpu_custom_call.1} parent=61 // pred_check_branch
          %197 = sbr.rel (%p195) target = $region66
        $region65: #{tpu_custom_call.1} parent=61 // pred_region
          %199 = dma.done %s191, 512
        $region66: #{tpu_custom_call.1} parent=61 // pred_fallthru
          _
        %s200 = sand.u32 %s53, 1
        %s201 = sand.u32 %s53, 1
        %s202 = smul.addr %s201, 24
        %s203 = scalar_lea.vmem [#allocation5], %s202
        // Predicated region
        $region67: #{tpu_custom_call.1} parent=61 // pred_check
          %p204 = pneg %p66
        $region68: #{tpu_custom_call.1} parent=61 // pred_check_branch
          %206 = sbr.rel (%p204) target = $region70
        $region69: #{tpu_custom_call.1} parent=61 // pred_region
          _
        $region70: #{tpu_custom_call.1} parent=61 // pred_fallthru
          _
        %s207 = sand.u32 %s27, 1
        %s208 = scalar_lea.sflag [#allocation3], %s207
        %s209 = sand.u32 %s27, 1
        %s210 = smul.addr %s209, 32
        %s211 = scalar_lea.vmem [#allocation2], %s210
        %p212 = pneg %p40
        %p213 = pneg %p37
        %s214 = sand.u32 %s53, 1
        %s215 = sand.u32 %s53, 1
        %s216 = smul.addr %s215, 24
        %s217 = scalar_lea.vmem [#allocation5], %s216
        %p218 = pneg %p66
        %p219 = pneg %p63
        %p220 = pneg %p92
        %p221 = pneg %p89
        %s222 = sand.u32 %s79, 1
        %s223 = scalar_lea.sflag [#allocation4], %s222
        %s224 = sand.u32 %s79, 1
        %s225 = smul.addr %s224, 32
        %s226 = scalar_lea.vmem [#allocation6], %s225
        %v227 = vld [vmem:[%s194] sm:$0xff]
        %v228 = vld [vmem:[%s194 + $0x8] sm:$0xff]
        %v229 = vld [vmem:[%s194 + $0x10] sm:$0xff]
        %v230 = vld [vmem:[%s194 + $0x18] sm:$0xff]
        %v231 = vadd.f32 %v227, %v229
        %v232 = vadd.f32 %v228, %v230
        %v233 = vadd.f32 %v231, %v232
        %234 = vadd.xlane.f32.xlu0 %v233
        %v235 = vpop.xlane.xlu0 %234
        %v236 = vmul.f32 %v227, %v227
        %v237 = vmul.f32 %v228, %v228
        %v238 = vmul.f32 %v229, %v229
        %v239 = vmul.f32 %v230, %v230
        %v240 = vadd.f32 %v236, %v238
        %v241 = vadd.f32 %v237, %v239
        %v242 = vadd.f32 %v240, %v241
        %243 = vadd.xlane.f32.xlu0 %v242
        %v244 = vpop.xlane.xlu0 %243
        %v245 = vmul.f32 %v235, 0.001953125
        %v246 = vmul.f32 %v244, 0.001953125
        %v247 = vmul.f32 %v245, %v245
        %v248 = vsub.f32 %v246, %v247
        %v249 = vmax.f32 %v248, 0.0
        %v250 = vadd.f32 %v249, 1e-05
        %v251 = vrsqrt.pop %v250
        %v252 = vmul.f32 %v251, %v250
        %v253 = vmul.f32 %v252, %v251
        %v254 = vmul.f32 0.5, %v253
        %v255 = vsub.f32 1.5, %v254
        %v256 = vmul.f32 %v251, %v255
        %vm257 = vweird.f32 %v250
        %vm258 = vweird.f32 %v251
        %vm259 = vmor %vm257, %vm258
        %v260 = vsel %vm259, %v251, %v256
        %v261 = vld [vmem:[%s203] sm:$0xff]
        %s262 = scalar_lea.vmem %s203, 8 [#allocation5]
        %v263 = vld [vmem:[%s262] sm:$0xff]
        %s264 = scalar_lea.vmem %s203, 16 [#allocation5]
        %v265 = vld [vmem:[%s264] sm:$0xff]
        %v266 = vmul.f32 %v261, %v260
        %v267 = vmul.f32 %v245, %v266
        %v268 = vsub.f32 %v263, %v267
        %270 = vset.pattern.permute.xlu0 0
        %271 = vperm.xlu0 %270, %v266
        %v272 = vpop.permute.xlu0 %271
        %v274 = vmul.f32 %v227, %v272
        %v275 = vmul.f32 %v228, %v272
        %v276 = vmul.f32 %v229, %v272
        %v277 = vmul.f32 %v230, %v272
        %279 = vset.pattern.permute.xlu0 0
        %280 = vperm.xlu0 %279, %v268
        %v281 = vpop.permute.xlu0 %280
        %v283 = vadd.f32 %v274, %v281
        %v284 = vadd.f32 %v275, %v281
        %v285 = vadd.f32 %v276, %v281
        %v286 = vadd.f32 %v277, %v281
        %vm287 = vcmp.gt.f32.partialorder %v283, 0.0
        %vm288 = vcmp.gt.f32.partialorder %v284, 0.0
        %vm289 = vcmp.gt.f32.partialorder %v285, 0.0
        %vm290 = vcmp.gt.f32.partialorder %v286, 0.0
        %292 = vset.pattern.permute.xlu0 0
        %293 = vperm.xlu0 %292, %v265
        %v294 = vpop.permute.xlu0 %293
        %v296 = vmul.f32 %v294, %v283
        %v297 = vmul.f32 %v294, %v284
        %v298 = vmul.f32 %v294, %v285
        %v299 = vmul.f32 %v294, %v286
        %v300 = vsel %vm287, %v283, %v296
        %v301 = vsel %vm288, %v284, %v297
        %v302 = vsel %vm289, %v285, %v298
        %v303 = vsel %vm290, %v286, %v299
        %304 = vst [vmem:[%s226] sm:$0xff] %v300
        %305 = vst [vmem:[%s226 + $0x8] sm:$0xff] %v301
        %306 = vst [vmem:[%s226 + $0x10] sm:$0xff] %v302
        %307 = vst [vmem:[%s226 + $0x18] sm:$0xff] %v303
        %s308 = sand.u32 %s79, 1
        %s309 = scalar_lea.sflag [#allocation4], %s308
        %s310 = sand.u32 %s79, 1
        %s311 = smul.addr %s310, 32
        %s312 = scalar_lea.vmem [#allocation6], %s311
        // Predicated region
        $region71: #{tpu_custom_call.1} parent=61 // pred_check
          %p313 = pneg %p89
        $region72: #{tpu_custom_call.1} parent=61 // pred_check_branch
          %315 = sbr.rel (%p313) target = $region74
        $region73: #{tpu_custom_call.1} parent=61 // pred_region
          %317 = vsyncadd %s309, 0
          %s318 = smul.addr %s19, 2
          %s319 = smul.addr %s318, 8
          %s320 = scalar_lea.hbm %s2, %s319
          %s321 = sshll.u32 %s312, 4
          %s322 = int_to_ptr.vmem [resolvable:$true] %s321
          %s323 = sshll.u32 %s320, 4
          %s324 = int_to_ptr.hbm [resolvable:$true] %s323
          %329 = dma.vmem_to_hbm [thread:$0]  %s322, 512, %s324, %s309, 256, 1024, 16
        $region74: #{tpu_custom_call.1} parent=61 // pred_fallthru
          _
      $region62: #{tpu_custom_call.1} parent=5 // pred_fallthru
        _
      %p330 = scmp.le.s32.totalorder 2, %s14
      // Predicated region
      $region75: #{tpu_custom_call.1} parent=5 // pred_check
        %p331 = pneg %p330
      $region76: #{tpu_custom_call.1} parent=5 // pred_check_branch
        %333 = sbr.rel (%p331) target = $region78
      $region77: #{tpu_custom_call.1} parent=5 // pred_region
        %s334 = ssub.s32 %s14, 2
        // Predicated region
        $region79: #{tpu_custom_call.1} parent=77 // pred_check
          %p335 = pneg %p95
        $region80: #{tpu_custom_call.1} parent=77 // pred_check_branch
          %337 = sbr.rel (%p335) target = $region82
        $region81: #{tpu_custom_call.1} parent=77 // pred_region
          %s338 = sand.u32 %s80, 1
          %s339 = scalar_lea.sflag [#allocation4], %s338
          %s340 = sand.u32 %s80, 1
          %s341 = smul.addr %s340, 32
          %s342 = scalar_lea.vmem [#allocation6], %s341
          %344 = dma.done %s339, 512
        $region82: #{tpu_custom_call.1} parent=77 // pred_fallthru
          _
      $region78: #{tpu_custom_call.1} parent=5 // pred_fallthru
        _
    $region6: #{tpu_custom_call.1} parent=1 // loop_footer
      %s18 = sadd.s32 1, %s14
    $region7: #{tpu_custom_call.1} parent=1 // loop_footer_branch
      %13 = sbr.rel target = $region3
    $region8: #{tpu_custom_call.1} parent=1 // loop_exit
      _
    %345 = vsyncpa [#allocation3], 1
    %s346 = scalar_lea.sflag [#allocation3], 1
    %347 = vsyncpa %s346, 1
    %348 = vsyncpa [#allocation4], 1
    %s349 = scalar_lea.sflag [#allocation4], 1
    %350 = vsyncpa %s349, 1

</llo_original>
